<compile_context>
chip_gen: v6e
topology: v6e:2x2x1
jax: 0.10.0
libtpu: 0.0.40
codegen_flags: <defaults>
</compile_context>

<pallas_src>
import jax
import jax.numpy as jnp
from jax.experimental import pallas as pl
from jax.experimental.pallas import tpu as pltpu


def _normalize_kernel(x_ref, o_ref):
    x = x_ref[...]
    # Upcast only when the input is not already f32 (no-op for this demo;
    # mandatory on v5e for bf16 inputs since its VPU has no bf16).
    xf = x if x.dtype == jnp.float32 else x.astype(jnp.float32)

    # Global min/max: VPU-first sublane fold (elementwise over rows), then a
    # single cross-lane XLU reduce per statistic.
    row_max = jnp.max(xf, axis=0, keepdims=True)   # (1, 128)  VPU fold
    row_min = jnp.min(xf, axis=0, keepdims=True)   # (1, 128)  VPU fold
    x_max = jnp.max(row_max)                       # cross-lane XLU reduce
    x_min = jnp.min(row_min)                       # cross-lane XLU reduce

    # NOTE: denom == 0 (data symmetric around 0) yields inf/NaN exactly like
    # the PyTorch reference formula -- semantic parity, intentionally unguarded.
    denom = x_max + x_min
    # Single divide instead of two; pl.reciprocal(denom, approx=True) would
    # move this onto the otherwise-idle EUP if a looser tolerance were allowed.
    inv = 1.0 / denom
    a = 2.0 * inv
    b = (x_min - x_max) * inv                      # == -(x_max - x_min) / denom

    o_ref[...] = (a * xf + b).astype(o_ref.dtype)


def normalize_pallas(x):
    """Applies the `normalize` forward pass via a single Pallas TPU kernel."""
    orig_shape = x.shape
    total = x.size
    LANES = 128
    # Lane-dense 2D slab: the last dim maps onto the 128-lane vreg axis.
    # The full block-spec (memory_space only, no grid) sidesteps the (8,128)
    # block constraint since the block equals the full array.
    assert total % LANES == 0, "demo wrapper expects element count divisible by 128"
    x2 = x.reshape(total // LANES, LANES)

    out2 = pl.pallas_call(
        _normalize_kernel,
        out_shape=jax.ShapeDtypeStruct(x2.shape, x.dtype),
        # Full-array VMEM residency; no grid, so no index_map arity to maintain.
        in_specs=[pl.BlockSpec(memory_space=pltpu.MemorySpace.VMEM)],
        out_specs=pl.BlockSpec(memory_space=pltpu.MemorySpace.VMEM),
        # Output has identical shape/dtype to the input: alias so XLA can do the
        # update in place and skip a separate HBM output allocation.
        input_output_aliases={0: 0},
    )(x2)
    return out2.reshape(orig_shape)


if __name__ == "__main__":
    key = jax.random.PRNGKey(0)
    # Shapes implied by an NCHW image-like input: batch=2, channels=4, spatial=16.
    x = jax.random.uniform(key, (2, 4, 16, 16), dtype=jnp.float32,
                           minval=0.1, maxval=2.0)

    # Reference (plain JAX) computed before the kernel call so the in-place
    # aliased output cannot disturb it.
    x_max = jnp.max(x)
    x_min = jnp.min(x)
    a_ref = 2.0 / (x_max + x_min)
    b_ref = -(x_max - x_min) / (x_max + x_min)
    y_ref = a_ref * x + b_ref

    y = jax.jit(normalize_pallas)(x)
    y = jax.block_until_ready(y)

    assert jnp.allclose(y, y_ref, atol=1e-5, rtol=1e-5), "mismatch vs reference"
    print("KERNEL_OK")
</pallas_src>

<mosaic_0001>
module attributes {stable_mosaic.version = 11 : i64} {
  func.func @_normalize_kernel(%arg0: memref<16x128xf32, #tpu.memory_space<vmem>>, %arg1: memref<16x128xf32, #tpu.memory_space<vmem>>) attributes {dimension_semantics = [], scalar_prefetch = 0 : i64, scratch_operands = 0 : i64, tpu.core_type = #tpu.core_type<tc>} {
    %c0 = arith.constant 0 : index
    %c0_0 = arith.constant 0 : index
    %0 = vector.load %arg0[%c0, %c0_0] : memref<16x128xf32, #tpu.memory_space<vmem>>, vector<16x128xf32>
    %cst = arith.constant dense<0xFF800000> : vector<128xf32>
    %1 = vector.multi_reduction <maximumf>, %0, %cst [0] : vector<16x128xf32> to vector<128xf32>
    %2 = vector.shape_cast %1 : vector<128xf32> to vector<1x128xf32>
    %cst_1 = arith.constant dense<0x7F800000> : vector<128xf32>
    %3 = vector.multi_reduction <minimumf>, %0, %cst_1 [0] : vector<16x128xf32> to vector<128xf32>
    %4 = vector.shape_cast %3 : vector<128xf32> to vector<1x128xf32>
    %5 = vector.shape_cast %2 : vector<1x128xf32> to vector<1x1x128xf32>
    %cst_2 = arith.constant dense<0xFF800000> : vector<1xf32>
    %6 = vector.multi_reduction <maximumf>, %5, %cst_2 [1, 2] : vector<1x1x128xf32> to vector<1xf32>
    %7 = vector.shape_cast %6 : vector<1xf32> to vector<1x1x1xf32>
    %8 = vector.extract %7[0, 0, 0] : f32 from vector<1x1x1xf32>
    %9 = vector.shape_cast %4 : vector<1x128xf32> to vector<1x1x128xf32>
    %cst_3 = arith.constant dense<0x7F800000> : vector<1xf32>
    %10 = vector.multi_reduction <minimumf>, %9, %cst_3 [1, 2] : vector<1x1x128xf32> to vector<1xf32>
    %11 = vector.shape_cast %10 : vector<1xf32> to vector<1x1x1xf32>
    %12 = vector.extract %11[0, 0, 0] : f32 from vector<1x1x1xf32>
    %13 = arith.addf %8, %12 : f32
    %cst_4 = arith.constant 1.000000e+00 : f32
    %14 = arith.divf %cst_4, %13 : f32
    %cst_5 = arith.constant 2.000000e+00 : f32
    %15 = arith.mulf %cst_5, %14 : f32
    %16 = arith.subf %12, %8 : f32
    %17 = arith.mulf %16, %14 : f32
    %18 = vector.broadcast %15 : f32 to vector<16x128xf32>
    %19 = arith.mulf %18, %0 : vector<16x128xf32>
    %20 = vector.broadcast %17 : f32 to vector<16x128xf32>
    %21 = arith.addf %19, %20 : vector<16x128xf32>
    %c0_6 = arith.constant 0 : index
    %c0_7 = arith.constant 0 : index
    %22 = vector.load %arg1[%c0_6, %c0_7] : memref<16x128xf32, #tpu.memory_space<vmem>>, vector<16x128xf32>
    tpu.vector_store %arg1[%c0_6, %c0_7], %21 {strides = array<i32>} : memref<16x128xf32, #tpu.memory_space<vmem>>, vector<16x128xf32>,
    return
  }
}

</mosaic_0001>

<llo_original>
// kernel: normalize_pallas.1
$region0: #{normalize_pallas.1}
  #allocation0 [shape = 'u32[]', space=smem, size = 0x4, offset = 0x4, fixed_abs, tag = 'smem constant byte address 0x4 - core index']
  #allocation1 [shape = 'u32[144,128]{1,0:T(1,128)}', space=vmem, size = 0x12000, scoped, tag = 'internal scratch']
  %s0 = inlined_call_operand.vmem [shape: f32[16,128], index: 0, kind: input, shape index: {}, may-alias: {0,1}]
  %s1 = inlined_call_operand.vmem [shape: f32[16,128], index: 1, kind: output, shape index: {}, may-alias: {0,1}]
  %s2 = sld [smem:[#allocation0]]
  $region14: #{normalize_pallas.1} parent=0
    _
  %s4 = ssub.s32 1, %s2
  %s5 = scalar_select 0, %s4, %s2
  // Predicated region
  $region2: #{normalize_pallas.1} parent=0 // pred_check
    _
  $region3: #{normalize_pallas.1} parent=0 // pred_check_branch
    %7 = sbr.rel (0) target = $region5
  $region4: #{normalize_pallas.1} parent=0 // pred_region
    _
  $region5: #{normalize_pallas.1} parent=0 // pred_fallthru
    _
  %v8 = vld [vmem:[%s0] sm:$0xff]
  %v9 = vld [vmem:[%s0 + $0x8] sm:$0xff]
  %v10 = vmax.f32 %v8, %v9
  %v11 = vrot.slane %v10, 4
  %v12 = vmax.f32 %v10, %v11
  %v13 = vrot.slane %v12, 2
  %v14 = vmax.f32 %v12, %v13
  %v15 = vrot.slane %v14, 1
  %v16 = vmax.f32 %v14, %v15
  %v17 = vmin.f32 %v8, %v9
  %v18 = vrot.slane %v17, 4
  %v19 = vmin.f32 %v17, %v18
  %v20 = vrot.slane %v19, 2
  %v21 = vmin.f32 %v19, %v20
  %v22 = vrot.slane %v21, 1
  %v23 = vmin.f32 %v21, %v22
  %24 = vmax.xlane.f32.xlu0 %v16
  %v25 = vpop.xlane.xlu0 %24
  %s26 = vtos %v25
  %27 = vmin.xlane.f32.xlu0 %v23
  %v28 = vpop.xlane.xlu0 %27
  %s29 = vtos %v28
  %s30 = sadd.f32 %s26, %s29
  %v31 = vstv %s30
  %v32 = vrcp.pop %v31
  %s33 = vtos %v32
  %s34 = smul.f32 %s33, 2.0
  %s35 = ssub.f32 %s29, %s26
  %s36 = smul.f32 %s35, %s33
  %v37 = vstv %s34
  %v38 = vmul.f32 %v37, %v8
  %v39 = vmul.f32 %v37, %v9
  %v40 = vstv %s36
  %v41 = vadd.f32 %v38, %v40
  %v42 = vadd.f32 %v39, %v40
  %43 = vst [vmem:[%s1] sm:$0xff] %v41
  %44 = vst [vmem:[%s1 + $0x8] sm:$0xff] %v42
  // Predicated region
  $region6: #{normalize_pallas.1} parent=0 // pred_check
    _
  $region7: #{normalize_pallas.1} parent=0 // pred_check_branch
    %46 = sbr.rel (0) target = $region9
  $region8: #{normalize_pallas.1} parent=0 // pred_region
    _
  $region9: #{normalize_pallas.1} parent=0 // pred_fallthru
    _
  // Predicated region
  $region10: #{normalize_pallas.1} parent=0 // pred_check
    _
  $region11: #{normalize_pallas.1} parent=0 // pred_check_branch
    %48 = sbr.rel (0) target = $region13
  $region12: #{normalize_pallas.1} parent=0 // pred_region
    _
  $region13: #{normalize_pallas.1} parent=0 // pred_fallthru
    _

</llo_original>
